<compile_context>
chip_gen: v7x
topology: tpu7x:2x2x1
jax: 0.10.0
libtpu: 0.0.40
codegen_flags: <defaults>
</compile_context>

<pallas_src>
import functools

import numpy as np
import jax
import jax.numpy as jnp
from jax.experimental import pallas as pl
from jax.experimental.pallas import tpu as pltpu


def _round_up(x, m):
    return (x + m - 1) // m * m


@functools.lru_cache(maxsize=None)
def _big_vmem_chip():
    """True on single-TensorCore 128 MiB-VMEM generations (v5e/v6e/v5p)."""
    try:
        kind = jax.devices()[0].device_kind.lower()
    except Exception:
        return False
    return ("v5" in kind) or ("v6" in kind)


# ----------------------------------------------------------------------------
# Generic Pallas matmul + bias (+ optional fused ReLU).
#   * MXU inputs cast to bf16 in-kernel (f32 accumulate); bias/ReLU in f32.
#   * nk == 1 path: 2-D grid, no accumulator scratch (review item).
# ----------------------------------------------------------------------------
def _mm_bias_kernel(x_ref, w_ref, b_ref, o_ref, *, relu):
    r = jnp.dot(x_ref[...].astype(jnp.bfloat16), w_ref[...].astype(jnp.bfloat16),
                preferred_element_type=jnp.float32) + b_ref[...]
    if relu:
        r = jnp.maximum(r, 0.0)
    o_ref[...] = r.astype(o_ref.dtype)


def _mm_bias_acc_kernel(x_ref, w_ref, b_ref, o_ref, acc_ref, *, relu, nk):
    @pl.when(pl.program_id(2) == 0)
    def _init():
        acc_ref[...] = jnp.zeros_like(acc_ref)

    acc_ref[...] += jnp.dot(x_ref[...].astype(jnp.bfloat16),
                            w_ref[...].astype(jnp.bfloat16),
                            preferred_element_type=jnp.float32)

    @pl.when(pl.program_id(2) == nk - 1)
    def _finalize():
        r = acc_ref[...] + b_ref[...]
        if relu:
            r = jnp.maximum(r, 0.0)
        o_ref[...] = r.astype(o_ref.dtype)


def pallas_matmul_bias(x, w, b, relu=False, out_dtype=jnp.float32):
    """y = relu?(x @ w + b).  x: (M, K), w: (K, N), b: (N,)."""
    M, K = x.shape
    Kw, N = w.shape
    assert K == Kw

    big = _big_vmem_chip()

    # ---- N tiling: full block when N is not a lane multiple (exempt from 128
    # rule); full-N (4096) tiles allowed on 128 MiB-VMEM single-TC chips.
    if N % 128 == 0:
        tn_cands = (4096, 2048, 1024, 512, 256, 128) if big else (2048, 1024, 512, 256, 128)
        tn = next(t for t in tn_cands if N % t == 0)
    else:
        tn = N

    # ---- K tiling: single full block whenever it fits (skips all K padding)
    if K <= 2048:
        tk = K
    else:
        tk = next((t for t in (2560, 2048, 1536, 1024, 512, 256, 128) if K % t == 0), K)

    # keep double-buffered bf16 weight tiles within the per-chip budget
    w_cap = (40 << 20) if big else (20 << 20)
    while tk * tn * 2 * 2 > w_cap and tn > 128 and N % (tn // 2) == 0:
        tn //= 2

    # ---- M tiling
    if M <= 1024:
        tm = max(_round_up(M, 16), 16)            # bf16 packs 2 rows / sublane
        if tm != M:
            x = jnp.pad(x, ((0, tm - M), (0, 0)))  # tiny (FC / first upsample)
        M_arr = tm
    else:
        # prefer the biggest tile when padding waste is small; the ragged last
        # block is handled by Pallas (row-independent matmul, no jnp.pad).
        fitting = [t for t in (2048, 1024, 512, 256)
                   if t * tk * x.dtype.itemsize * 2 <= (12 << 20)] or [256]
        tm = next((t for t in fitting if _round_up(M, t) <= M * 1.10), None)
        if tm is None:
            tm = min(fitting, key=lambda t: (_round_up(M, t), -t))
        M_arr = M

    nk = K // tk if K % tk == 0 else 1
    b2 = b.reshape(1, N).astype(jnp.float32)
    grid_m = pl.cdiv(M_arr, tm)
    grid_n = N // tn
    vmem_limit = (64 << 20) if big else (48 << 20)

    if nk == 1:
        out = pl.pallas_call(
            functools.partial(_mm_bias_kernel, relu=relu),
            out_shape=jax.ShapeDtypeStruct((M_arr, N), out_dtype),
            grid_spec=pltpu.PrefetchScalarGridSpec(
                num_scalar_prefetch=0,
                grid=(grid_m, grid_n),
                in_specs=[
                    pl.BlockSpec((tm, tk), lambda i, j: (i, 0)),
                    pl.BlockSpec((tk, tn), lambda i, j: (0, j)),
                    pl.BlockSpec((1, tn), lambda i, j: (0, j)),
                ],
                out_specs=pl.BlockSpec((tm, tn), lambda i, j: (i, j)),
            ),
            compiler_params=pltpu.CompilerParams(
                dimension_semantics=("parallel", "parallel"),
                vmem_limit_bytes=vmem_limit),
        )(x, w, b2)
    else:
        out = pl.pallas_call(
            functools.partial(_mm_bias_acc_kernel, relu=relu, nk=nk),
            out_shape=jax.ShapeDtypeStruct((M_arr, N), out_dtype),
            grid_spec=pltpu.PrefetchScalarGridSpec(
                num_scalar_prefetch=0,
                grid=(grid_m, grid_n, nk),
                in_specs=[
                    pl.BlockSpec((tm, tk), lambda i, j, k: (i, k)),
                    pl.BlockSpec((tk, tn), lambda i, j, k: (k, j)),
                    pl.BlockSpec((1, tn), lambda i, j, k: (0, j)),
                ],
                out_specs=pl.BlockSpec((tm, tn), lambda i, j, k: (i, j)),
                scratch_shapes=[pltpu.VMEM((tm, tn), jnp.float32)],
            ),
            compiler_params=pltpu.CompilerParams(
                dimension_semantics=("parallel", "parallel", "arbitrary"),
                vmem_limit_bytes=vmem_limit),
        )(x, w, b2)
    return out[:M] if M_arr != M else out


# ----------------------------------------------------------------------------
# Pallas window-reduction kernel (max-pool / adaptive-avg-pool).
# Stride handled by an XLA-side polyphase split (total bytes == input); the
# kernel reduces over unit-stride slices of whole feature maps.  f32 math is
# kept deliberately (identical results on every TPU generation).
# ----------------------------------------------------------------------------
def _pool_kernel(*refs, offsets, ho, wo, op, inv_count):
    o_ref = refs[-1]
    acc = None
    for pref, offs in zip(refs[:-1], offsets):
        for (ma, mb) in offs:
            v = pref[0, ma:ma + ho, mb:mb + wo, :].astype(jnp.float32)
            if acc is None:
                acc = v
            elif op == "max":
                acc = jnp.maximum(acc, v)
            else:
                acc = acc + v
    if op == "mean":
        acc = acc * inv_count
    o_ref[0, :, :, :] = acc.astype(o_ref.dtype)


def pallas_pool(x, ksize, stride, op):
    """x: (B, H, W, C) NHWC.  Window reduction (max or mean), no padding."""
    B, H, W, C = x.shape
    ho = (H - ksize) // stride + 1
    wo = (W - ksize) // stride + 1

    phases, specs, offsets = [], [], []
    for a in range(stride):
        r_offs = list(range(len(range(a, ksize, stride))))
        for c in range(stride):
            c_offs = list(range(len(range(c, ksize, stride))))
            ph = x[:, a::stride, c::stride, :]          # decimated view (XLA glue)
            phases.append(ph)
            specs.append(pl.BlockSpec((1,) + ph.shape[1:],
                                      lambda bb: (bb, 0, 0, 0)))
            offsets.append([(ma, mb) for ma in r_offs for mb in c_offs])

    return pl.pallas_call(
        functools.partial(_pool_kernel, offsets=offsets, ho=ho, wo=wo, op=op,
                          inv_count=1.0 / (ksize * ksize)),
        out_shape=jax.ShapeDtypeStruct((B, ho, wo, C), x.dtype),
        grid_spec=pltpu.PrefetchScalarGridSpec(
            num_scalar_prefetch=0,
            grid=(B,),
            in_specs=specs,
            out_specs=pl.BlockSpec((1, ho, wo, C), lambda bb: (bb, 0, 0, 0)),
        ),
        compiler_params=pltpu.CompilerParams(
            dimension_semantics=("parallel",)),
    )(*phases)


# ----------------------------------------------------------------------------
# Conv helpers (im2col glue + Pallas matmul).  Activations are bf16.
# ----------------------------------------------------------------------------
def im2col(x, kh, kw, stride):
    """x: (B, H, W, C) -> (B, Ho, Wo, kh*kw*C) with (i, j, c) ordering."""
    B, H, W, C = x.shape
    Ho = (H - kh) // stride + 1
    Wo = (W - kw) // stride + 1
    cols = []
    for i in range(kh):
        for j in range(kw):
            cols.append(x[:, i:i + stride * (Ho - 1) + 1:stride,
                             j:j + stride * (Wo - 1) + 1:stride, :])
    return jnp.concatenate(cols, axis=-1), Ho, Wo


def conv1x1(x, w, b, relu=True):
    B, H, W, Cin = x.shape
    Cout = w.shape[1]
    y = pallas_matmul_bias(x.reshape(B * H * W, Cin), w, b,
                           relu=relu, out_dtype=jnp.bfloat16)
    return y.reshape(B, H, W, Cout)


def conv3x3(x, w2d, b, stride, padding, relu=True):
    # w2d: (9*Cin, Cout), flattened in (i, j, cin) order to match im2col.
    if padding:
        x = jnp.pad(x, ((0, 0), (padding, padding), (padding, padding), (0, 0)))
    B = x.shape[0]
    Cout = w2d.shape[1]
    patches, Ho, Wo = im2col(x, 3, 3, stride)
    y = pallas_matmul_bias(patches.reshape(B * Ho * Wo, patches.shape[-1]),
                           w2d, b, relu=relu, out_dtype=jnp.bfloat16)
    return y.reshape(B, Ho, Wo, Cout)


def fire(x, p):
    """Fire module: squeeze conv, then ONE fused matmul that writes the
    concatenated [expand1x1 | expand3x3] output lane-dense (128/256 wide).
    The expand1x1 weights live in the center-tap rows of the combined
    (9*Cs, 2*Ce) weight; zero rows contribute exactly 0 (same numerics)."""
    s = conv1x1(x, p["ws"], p["bs"], relu=True)
    return conv3x3(s, p["wexp"], p["bexp"], stride=1, padding=1, relu=True)


def convnet(p, x_nhwc):
    """Truncated SqueezeNet-1.1 features (layers 0..8).  NHWC in / NHWC out."""
    x = conv3x3(x_nhwc, p["w1"], p["b1"], stride=2, padding=0, relu=True)
    x = pallas_pool(x, 3, 2, "max")      # ceil_mode exact for 256x256 inputs
    x = fire(x, p["fire3"])
    x = fire(x, p["fire4"])
    x = pallas_pool(x, 3, 2, "max")
    x = fire(x, p["fire6"])
    x = fire(x, p["fire7"])
    x = pallas_pool(x, 3, 2, "max")
    return x                             # (2B, 15, 15, 256)


# ----------------------------------------------------------------------------
# Bilinear upsample (align_corners=False) as two Pallas matmuls, NHWC output
# ----------------------------------------------------------------------------
def _interp_matrix(n_in, n_out):
    scale = n_in / n_out
    dst = np.arange(n_out, dtype=np.float64)
    src = np.maximum((dst + 0.5) * scale - 0.5, 0.0)
    lo = np.minimum(np.floor(src).astype(np.int64), n_in - 1)
    hi = np.minimum(lo + 1, n_in - 1)
    frac = src - lo
    m = np.zeros((n_out, n_in), dtype=np.float32)
    m[np.arange(n_out), lo] += (1.0 - frac)
    m[np.arange(n_out), hi] += frac
    return jnp.asarray(m)


def upsample_bilinear_nhwc(x_nchw, out_h, out_w):
    """x: (B, C, H, W) NCHW -> (B, out_h, out_w, C) NHWC, bilinear."""
    B, C, H, W = x_nchw.shape
    Mw = _interp_matrix(W, out_w)                    # (out_w, W)
    Mh = _interp_matrix(H, out_h)                    # (out_h, H)
    zw = jnp.zeros((out_w,), jnp.float32)
    zh = jnp.zeros((out_h,), jnp.float32)
    t = pallas_matmul_bias(x_nchw.reshape(B * C * H, W), Mw.T, zw,
                           out_dtype=jnp.bfloat16)                    # interp W
    t = t.reshape(B, C, H, out_w).transpose(0, 1, 3, 2).reshape(B * C * out_w, H)
    t = pallas_matmul_bias(t, Mh.T, zh, out_dtype=jnp.bfloat16)       # interp H
    # rows are (b, c, wo), cols are ho  ->  NHWC directly
    return t.reshape(B, C, out_w, out_h).transpose(0, 3, 2, 1)


# ----------------------------------------------------------------------------
# Full forward pass (matches SPPSqueezeGoNet2.forward)
# ----------------------------------------------------------------------------
def forward(params, x1, x2, x1_x2, x2_x2):
    # x1 / x2 are unused in the original forward (they are overwritten).
    del x1, x2
    B = x1_x2.shape[0]

    # Batch the two streams through one trunk pass (weights stream once).
    xb = jnp.concatenate([x1_x2, x2_x2], axis=0)             # (2B, 3, h, w)
    up = upsample_bilinear_nhwc(xb, 256, 256)                 # (2B, 256, 256, 3)
    feats = convnet(params["conv"], up)                       # (2B, 15, 15, 256)
    pooled = pallas_pool(feats, 3, 3, "mean")                 # AdaptiveAvgPool2d((5,5))

    def flat(f):            # NHWC -> flattened NCHW order (matches torch .view)
        return jnp.transpose(f, (0, 3, 1, 2)).reshape(f.shape[0], -1)

    crops = flat(feats[:, 5:10, 5:10, :])                     # (2B, 6400)
    pools = flat(pooled)                                      # (2B, 6400)
    x = jnp.concatenate([crops[:B], crops[B:], pools[:B], pools[B:]], axis=1)

    h = pallas_matmul_bias(x, params["fc1_w"], params["fc1_b"], relu=True)
    h = pallas_matmul_bias(h, params["fc2_w"], params["fc2_b"], relu=True)
    h = pallas_matmul_bias(h, params["fc3_w"], params["fc3_b"], relu=True)
    out = pallas_matmul_bias(h, params["fc4_w"], params["fc4_b"], relu=False)
    return out                                                # (B, 4)


# ----------------------------------------------------------------------------
# Deterministic parameter init (weights stored pre-reshaped, bf16)
# ----------------------------------------------------------------------------
def init_params(key):
    keys = iter(jax.random.split(key, 64))
    bf16 = jnp.bfloat16

    def conv_w(shape):
        fan_in = int(np.prod(shape[:-1]))
        w = jax.random.normal(next(keys), shape, jnp.float32) * np.sqrt(2.0 / fan_in)
        if len(shape) == 4:                # (kh, kw, cin, cout) -> (kh*kw*cin, cout)
            w = w.reshape(-1, shape[-1])
        return w

    def fire_p(cin, cs, ce):
        ws = conv_w((cin, cs))
        we1 = conv_w((cs, ce))
        we3 = conv_w((3, 3, cs, ce))                     # (9*cs, ce)
        wexp = jnp.zeros((9 * cs, 2 * ce), jnp.float32)
        wexp = wexp.at[4 * cs:5 * cs, :ce].set(we1)      # center tap = squeeze map
        wexp = wexp.at[:, ce:].set(we3)
        return dict(ws=ws.astype(bf16), bs=jnp.zeros((cs,), jnp.float32),
                    wexp=wexp.astype(bf16), bexp=jnp.zeros((2 * ce,), jnp.float32))

    conv = dict(w1=conv_w((3, 3, 3, 64)).astype(bf16), b1=jnp.zeros((64,), jnp.float32),
                fire3=fire_p(64, 16, 64), fire4=fire_p(128, 16, 64),
                fire6=fire_p(128, 32, 128), fire7=fire_p(256, 32, 128))

    def lin(cin, cout):                 # module weight_init: N(0, 0.005), bias = 1
        w = (jax.random.normal(next(keys), (cin, cout), jnp.float32) * 0.005).astype(bf16)
        return w, jnp.ones((cout,), jnp.float32)

    fc1_w, fc1_b = lin(256 * 5 * 5 * 4, 4096)
    fc2_w, fc2_b = lin(4096, 4096)
    fc3_w, fc3_b = lin(4096, 4096)
    fc4_w, fc4_b = lin(4096, 4)
    return dict(conv=conv,
                fc1_w=fc1_w, fc1_b=fc1_b, fc2_w=fc2_w, fc2_b=fc2_b,
                fc3_w=fc3_w, fc3_b=fc3_b, fc4_w=fc4_w, fc4_b=fc4_b)


# ----------------------------------------------------------------------------
# Small self-checks (kernel vs. plain-JAX reference), then the full forward.
# ----------------------------------------------------------------------------
def _self_checks(key):
    ka, kb, kc, kd = jax.random.split(key, 4)

    # matmul + bias + relu
    xs = jax.random.normal(ka, (100, 70), jnp.float32)
    ws = jax.random.normal(kb, (70, 36), jnp.float32) * 0.1
    bs = jax.random.normal(kc, (36,), jnp.float32)
    got = pallas_matmul_bias(xs, ws, bs, relu=True)
    ref = jnp.maximum(jnp.dot(xs.astype(jnp.bfloat16), ws.astype(jnp.bfloat16),
                              preferred_element_type=jnp.float32) + bs, 0.0)
    assert bool(jnp.allclose(got, ref, atol=2e-2, rtol=2e-2))

    # max pool
    xp = jax.random.normal(kd, (2, 9, 9, 128), jnp.float32).astype(jnp.bfloat16)
    gp = pallas_pool(xp, 3, 2, "max").astype(jnp.float32)
    rp = jax.lax.reduce_window(xp.astype(jnp.float32), -jnp.inf, jax.lax.max,
                               (1, 3, 3, 1), (1, 2, 2, 1), "VALID")
    assert bool(jnp.allclose(gp, rp, atol=1e-6))


if __name__ == "__main__":
    key = jax.random.PRNGKey(0)
    pk, ck, k1, k2, k3, k4 = jax.random.split(key, 6)

    _self_checks(ck)

    params = init_params(pk)
    B = 2
    x1 = jax.random.normal(k1, (B, 3, 16, 16), jnp.float32)     # unused by forward
    x2 = jax.random.normal(k2, (B, 3, 16, 16), jnp.float32)     # unused by forward
    x1_x2 = jax.random.normal(k3, (B, 3, 16, 16), jnp.float32)  # NCHW, upsampled to 256x256
    x2_x2 = jax.random.normal(k4, (B, 3, 16, 16), jnp.float32)

    out = jax.jit(forward)(params, x1, x2, x1_x2, x2_x2)
    out = jax.block_until_ready(out)
    assert out.shape == (B, 4)
    assert bool(jnp.all(jnp.isfinite(out.astype(jnp.float32))))
    print("KERNEL_OK")
</pallas_src>

<mosaic_0001>
module attributes {stable_mosaic.version = 11 : i64} {
  func.func @_mm_bias_kernel(%arg0: i32, %arg1: i32, %arg2: memref<112x70xf32, #tpu.memory_space<vmem>>, %arg3: memref<70x36xf32, #tpu.memory_space<vmem>>, %arg4: memref<1x36xf32, #tpu.memory_space<vmem>>, %arg5: memref<112x36xf32, #tpu.memory_space<vmem>>) attributes {dimension_semantics = [#tpu.dimension_semantics<parallel>, #tpu.dimension_semantics<parallel>], iteration_bounds = array<i64: 1, 1>, scalar_prefetch = 0 : i64, scratch_operands = 0 : i64, tpu.core_type = #tpu.core_type<tc>, window_params = [{transform_indices = @transform_0, window_bounds = array<i64: 112, 70>}, {transform_indices = @transform_1, window_bounds = array<i64: 70, 36>}, {transform_indices = @transform_2, window_bounds = array<i64: 1, 36>}, {transform_indices = @transform_3, window_bounds = array<i64: 112, 36>}]} {
    %c0 = arith.constant 0 : index
    %c0_0 = arith.constant 0 : index
    %0 = vector.load %arg2[%c0, %c0_0] : memref<112x70xf32, #tpu.memory_space<vmem>>, vector<112x70xf32>
    %1 = arith.truncf %0 : vector<112x70xf32> to vector<112x70xbf16>
    %c0_1 = arith.constant 0 : index
    %c0_2 = arith.constant 0 : index
    %2 = vector.load %arg3[%c0_1, %c0_2] : memref<70x36xf32, #tpu.memory_space<vmem>>, vector<70x36xf32>
    %3 = arith.truncf %2 : vector<70x36xf32> to vector<70x36xbf16>
    %cst = arith.constant dense<0.000000e+00> : vector<112x36xf32>
    %4 = tpu.matmul %1, %3, %cst {dimension_numbers = #tpu.dot_dimension_numbers<[1], [0], [0], [1], [0, 0, 1, 1], [], []>} : vector<112x70xbf16>, vector<70x36xbf16>, vector<112x36xf32> -> vector<112x36xf32>
    %c0_3 = arith.constant 0 : index
    %c0_4 = arith.constant 0 : index
    %5 = vector.load %arg4[%c0_3, %c0_4] : memref<1x36xf32, #tpu.memory_space<vmem>>, vector<1x36xf32>
    %6 = vector.broadcast %5 : vector<1x36xf32> to vector<112x36xf32>
    %7 = arith.addf %4, %6 : vector<112x36xf32>
    %cst_5 = arith.constant 0.000000e+00 : f32
    %8 = vector.broadcast %cst_5 : f32 to vector<112x36xf32>
    %9 = arith.maximumf %7, %8 : vector<112x36xf32>
    %c0_6 = arith.constant 0 : index
    %c0_7 = arith.constant 0 : index
    %10 = vector.load %arg5[%c0_6, %c0_7] : memref<112x36xf32, #tpu.memory_space<vmem>>, vector<112x36xf32>
    tpu.vector_store %arg5[%c0_6, %c0_7], %9 {strides = array<i32>} : memref<112x36xf32, #tpu.memory_space<vmem>>, vector<112x36xf32>,
    return
  }
  func.func @transform_0(%arg0: i32, %arg1: i32) -> (i32, i32) {
    %c0_i32 = arith.constant 0 : i32
    %c0_i32_0 = arith.constant 0 : i32
    return %arg0, %c0_i32 : i32, i32
  }
  func.func @transform_1(%arg0: i32, %arg1: i32) -> (i32, i32) {
    %c0_i32 = arith.constant 0 : i32
    %c0_i32_0 = arith.constant 0 : i32
    return %c0_i32, %arg1 : i32, i32
  }
  func.func @transform_2(%arg0: i32, %arg1: i32) -> (i32, i32) {
    %c0_i32 = arith.constant 0 : i32
    %c0_i32_0 = arith.constant 0 : i32
    return %c0_i32, %arg1 : i32, i32
  }
  func.func @transform_3(%arg0: i32, %arg1: i32) -> (i32, i32) {
    %c0_i32 = arith.constant 0 : i32
    return %arg0, %arg1 : i32, i32
  }
}

</mosaic_0001>

<llo_original>
// kernel: tpu_custom_call.1
$region0: #{tpu_custom_call.1}
  #allocation0 [shape = 'u32[]', space=smem, size = 0x4, offset = 0x4, fixed_abs, tag = 'smem constant byte address 0x4 - core index']
  #allocation1 [shape = 'u32[144,128]{1,0:T(1,128)}', space=vmem, size = 0x12000, scoped, tag = 'internal scratch']
  %s0 = inlined_call_operand.vmem [shape: f32[112,70], index: 0, kind: input, shape index: {}]
  %s1 = inlined_call_operand.vmem [shape: f32[70,36], index: 1, kind: input, shape index: {}]
  %s2 = inlined_call_operand.vmem [shape: f32[1,36], index: 2, kind: input, shape index: {}]
  %s3 = inlined_call_operand.vmem [shape: f32[112,36], index: 3, kind: output, shape index: {}]
  %s4 = sld [smem:[#allocation0]]
  $region22: #{tpu_custom_call.1} parent=0
    _
  %s6 = ssub.s32 1, %s4
  %s7 = scalar_select 0, %s6, %s4
  // Predicated region
  $region2: #{tpu_custom_call.1} parent=0 // pred_check
    _
  $region3: #{tpu_custom_call.1} parent=0 // pred_check_branch
    %9 = sbr.rel (0) target = $region5
  $region4: #{tpu_custom_call.1} parent=0 // pred_region
    _
  $region5: #{tpu_custom_call.1} parent=0 // pred_fallthru
    _
  // Predicated region
  $region6: #{tpu_custom_call.1} parent=0 // pred_check
    _
  $region7: #{tpu_custom_call.1} parent=0 // pred_check_branch
    %11 = sbr.rel (0) target = $region9
  $region8: #{tpu_custom_call.1} parent=0 // pred_region
    _
  $region9: #{tpu_custom_call.1} parent=0 // pred_fallthru
    _
  // Predicated region
  $region10: #{tpu_custom_call.1} parent=0 // pred_check
    _
  $region11: #{tpu_custom_call.1} parent=0 // pred_check_branch
    %13 = sbr.rel (0) target = $region13
  $region12: #{tpu_custom_call.1} parent=0 // pred_region
    _
  $region13: #{tpu_custom_call.1} parent=0 // pred_fallthru
    _
  %v15 = vld [vmem:[%s0] sm:$0xff]
  %v16 = vld [vmem:[%s0 + $0x8] sm:$0xff]
  %v17 = vld [vmem:[%s0 + $0x10] sm:$0xff]
  %v18 = vld [vmem:[%s0 + $0x18] sm:$0xff]
  %v19 = vld [vmem:[%s0 + $0x20] sm:$0xff]
  %v20 = vld [vmem:[%s0 + $0x28] sm:$0xff]
  %v21 = vld [vmem:[%s0 + $0x30] sm:$0xff]
  %v22 = vld [vmem:[%s0 + $0x38] sm:$0xff]
  %v23 = vld [vmem:[%s0 + $0x40] sm:$0xff]
  %v24 = vld [vmem:[%s0 + $0x48] sm:$0xff]
  %v25 = vld [vmem:[%s0 + $0x50] sm:$0xff]
  %v26 = vld [vmem:[%s0 + $0x58] sm:$0xff]
  %v27 = vld [vmem:[%s0 + $0x60] sm:$0xff]
  %v28 = vld [vmem:[%s0 + $0x68] sm:$0xff]
  %v29 = vpack.c.bf16 %v16, %v15
  %v30 = vpack.c.bf16 %v18, %v17
  %v31 = vpack.c.bf16 %v20, %v19
  %v32 = vpack.c.bf16 %v22, %v21
  %v33 = vpack.c.bf16 %v24, %v23
  %v34 = vpack.c.bf16 %v26, %v25
  %v35 = vpack.c.bf16 %v28, %v27
  %v36 = vld [vmem:[%s1] sm:$0xff]
  %v37 = vld [vmem:[%s1 + $0x8] sm:$0xff]
  %v38 = vld [vmem:[%s1 + $0x10] sm:$0xff]
  %v39 = vld [vmem:[%s1 + $0x18] sm:$0xff]
  %v40 = vld [vmem:[%s1 + $0x20] sm:$0xff]
  %v41 = vld [vmem:[%s1 + $0x28] sm:$0xff]
  %v42 = vld [vmem:[%s1 + $0x30] sm:$0xff]
  %v43 = vld [vmem:[%s1 + $0x38] sm:$0xff]
  %v44 = vld [vmem:[%s1 + $0x40] sm:$0x3f]
  %v45 = vpack.c.bf16 %v37, %v36
  %v46 = vpack.c.bf16 %v39, %v38
  %v47 = vpack.c.bf16 %v41, %v40
  %v48 = vpack.c.bf16 %v43, %v42
  %v49 = vpack.c.bf16 %v44, %v44
  %v50 = vld [vmem:[%s2] sm:$0x1]
  %v52 = vlaneseq
  %v53 = vshrl.u32 %v52, 7
  %v54 = vsub.s32 0, %v53
  %v55 = vrot.slane %v50, %v54
  %vm57 = vcmask 572416
  %v59 = vsel %vm57, %v29, 0
  %v62 = vsel %vm57, %v30, 0
  %v65 = vsel %vm57, %v31, 0
  %v68 = vsel %vm57, %v32, 0
  %v71 = vsel %vm57, %v33, 0
  %v74 = vsel %vm57, %v34, 0
  %v77 = vsel %vm57, %v35, 0
  %vm79 = vcmask 1042432
  %v81 = vsel %vm79, %v49, 0
  %83 = vmatprep.subr.bf16.mxu0 0
  %84 = vmatpush1.bf16.msra.mxu0 %v45
  %85 = vmatprep.subr.bf16.mxu0 0
  %86 = vmatpush1.bf16.msra.mxu0 %v46
  %87 = vmatprep.subr.bf16.mxu0 0
  %88 = vmatpush1.bf16.msra.mxu0 %v47
  %89 = vmatprep.subr.bf16.mxu0 0
  %90 = vmatpush1.bf16.msra.mxu0 %v48
  %91 = vmatprep.subr.bf16.mxu0 0
  %92 = vmatpush1.bf16.msra.mxu0 %v81
  %93 = vmatprep.subr.bf16.mxu0 0
  %94 = vmatpush1.bf16.msra.mxu0 0
  %95 = vmatprep.subr.bf16.mxu0 0
  %96 = vmatpush1.bf16.msra.mxu0 0
  %97 = vmatprep.subr.bf16.mxu0 0
  %98 = vmatpush1.bf16.msra.mxu0 0
  %99 = vmatprep.subr.bf16.mxu0 0
  %100 = vmatpush1.bf16.msra.mxu0 0
  %101 = vmatprep.subr.bf16.mxu0 0
  %102 = vmatpush1.bf16.msra.mxu0 0
  %103 = vmatprep.subr.bf16.mxu0 0
  %104 = vmatpush1.bf16.msra.mxu0 0
  %105 = vmatprep.subr.bf16.mxu0 0
  %106 = vmatpush1.bf16.msra.mxu0 0
  %107 = vmatprep.subr.bf16.mxu0 0
  %108 = vmatpush1.bf16.msra.mxu0 0
  %109 = vmatprep.subr.bf16.mxu0 0
  %110 = vmatpush1.bf16.msra.mxu0 0
  %111 = vmatprep.subr.bf16.mxu0 0
  %112 = vmatpush1.bf16.msra.mxu0 0
  %113 = vmatprep.subr.bf16.mxu0 0
  %114 = vmatpush1.bf16.msra.mxu0 0
  %115 = vmatprep.mubr.bf16.mxu0 0
  %116 = vmatmul.mubr.bf16.gmra.mrb[0].mxu0 %v59
  %v117 = vpop.f32.mrb[0].mxu0
  %v118 = vadd.f32 %v55, %v117
  %v119 = vpop.f32.mrb[0].mxu0
  %v120 = vpop.f32.mrb[0].mxu0
  %v121 = vadd.f32 %v55, %v120
  %v122 = vpop.f32.mrb[0].mxu0
  %123 = vmatprep.mubr.bf16.mxu0 0
  %124 = vmatmul.mubr.bf16.gmra.mrb[0].mxu0 %v62
  %v125 = vpop.f32.mrb[0].mxu0
  %v126 = vadd.f32 %v55, %v125
  %v127 = vpop.f32.mrb[0].mxu0
  %v128 = vpop.f32.mrb[0].mxu0
  %v129 = vadd.f32 %v55, %v128
  %v130 = vpop.f32.mrb[0].mxu0
  %131 = vmatprep.mubr.bf16.mxu0 0
  %132 = vmatmul.mubr.bf16.gmra.mrb[0].mxu0 %v65
  %v133 = vpop.f32.mrb[0].mxu0
  %v134 = vadd.f32 %v55, %v133
  %v135 = vpop.f32.mrb[0].mxu0
  %v136 = vpop.f32.mrb[0].mxu0
  %v137 = vadd.f32 %v55, %v136
  %v138 = vpop.f32.mrb[0].mxu0
  %139 = vmatprep.mubr.bf16.mxu0 0
  %140 = vmatmul.mubr.bf16.gmra.mrb[0].mxu0 %v68
  %v141 = vpop.f32.mrb[0].mxu0
  %v142 = vadd.f32 %v55, %v141
  %v143 = vpop.f32.mrb[0].mxu0
  %v144 = vpop.f32.mrb[0].mxu0
  %v145 = vadd.f32 %v55, %v144
  %v146 = vpop.f32.mrb[0].mxu0
  %147 = vmatprep.mubr.bf16.mxu0 0
  %148 = vmatmul.mubr.bf16.gmra.mrb[0].mxu0 %v71
  %v149 = vpop.f32.mrb[0].mxu0
  %v150 = vadd.f32 %v55, %v149
  %v151 = vpop.f32.mrb[0].mxu0
  %v152 = vpop.f32.mrb[0].mxu0
  %v153 = vadd.f32 %v55, %v152
  %v154 = vpop.f32.mrb[0].mxu0
  %155 = vmatprep.mubr.bf16.mxu0 0
  %156 = vmatmul.mubr.bf16.gmra.mrb[0].mxu0 %v74
  %v157 = vpop.f32.mrb[0].mxu0
  %v158 = vadd.f32 %v55, %v157
  %v159 = vpop.f32.mrb[0].mxu0
  %v160 = vpop.f32.mrb[0].mxu0
  %v161 = vadd.f32 %v55, %v160
  %v162 = vpop.f32.mrb[0].mxu0
  %163 = vmatprep.mubr.bf16.mxu0 0
  %164 = vmatmul.mubr.bf16.gmra.mrb[0].mxu0 %v77
  %v165 = vpop.f32.mrb[0].mxu0
  %v166 = vadd.f32 %v55, %v165
  %v167 = vpop.f32.mrb[0].mxu0
  %v168 = vpop.f32.mrb[0].mxu0
  %v169 = vadd.f32 %v55, %v168
  %v170 = vpop.f32.mrb[0].mxu0
  %171 = vdwg.mxu0
  %v172 = vmax.f32 %v118, 0.0
  %v173 = vmax.f32 %v121, 0.0
  %v174 = vmax.f32 %v126, 0.0
  %v175 = vmax.f32 %v129, 0.0
  %v176 = vmax.f32 %v134, 0.0
  %v177 = vmax.f32 %v137, 0.0
  %v178 = vmax.f32 %v142, 0.0
  %v179 = vmax.f32 %v145, 0.0
  %v180 = vmax.f32 %v150, 0.0
  %v181 = vmax.f32 %v153, 0.0
  %v182 = vmax.f32 %v158, 0.0
  %v183 = vmax.f32 %v161, 0.0
  %v184 = vmax.f32 %v166, 0.0
  %v185 = vmax.f32 %v169, 0.0
  %vm186 = vcmask 293888
  %187 = vst.msk [vmem:[%s3] sm:$0xff] %vm186, %v172
  %188 = vst.msk [vmem:[%s3 + $0x8] sm:$0xff] %vm186, %v173
  %189 = vst.msk [vmem:[%s3 + $0x10] sm:$0xff] %vm186, %v174
  %190 = vst.msk [vmem:[%s3 + $0x18] sm:$0xff] %vm186, %v175
  %191 = vst.msk [vmem:[%s3 + $0x20] sm:$0xff] %vm186, %v176
  %192 = vst.msk [vmem:[%s3 + $0x28] sm:$0xff] %vm186, %v177
  %193 = vst.msk [vmem:[%s3 + $0x30] sm:$0xff] %vm186, %v178
  %194 = vst.msk [vmem:[%s3 + $0x38] sm:$0xff] %vm186, %v179
  %195 = vst.msk [vmem:[%s3 + $0x40] sm:$0xff] %vm186, %v180
  %196 = vst.msk [vmem:[%s3 + $0x48] sm:$0xff] %vm186, %v181
  %197 = vst.msk [vmem:[%s3 + $0x50] sm:$0xff] %vm186, %v182
  %198 = vst.msk [vmem:[%s3 + $0x58] sm:$0xff] %vm186, %v183
  %199 = vst.msk [vmem:[%s3 + $0x60] sm:$0xff] %vm186, %v184
  %200 = vst.msk [vmem:[%s3 + $0x68] sm:$0xff] %vm186, %v185
  // Predicated region
  $region14: #{tpu_custom_call.1} parent=0 // pred_check
    _
  $region15: #{tpu_custom_call.1} parent=0 // pred_check_branch
    %202 = sbr.rel (0) target = $region17
  $region16: #{tpu_custom_call.1} parent=0 // pred_region
    _
  $region17: #{tpu_custom_call.1} parent=0 // pred_fallthru
    _
  // Predicated region
  $region18: #{tpu_custom_call.1} parent=0 // pred_check
    _
  $region19: #{tpu_custom_call.1} parent=0 // pred_check_branch
    %204 = sbr.rel (0) target = $region21
  $region20: #{tpu_custom_call.1} parent=0 // pred_region
    _
  $region21: #{tpu_custom_call.1} parent=0 // pred_fallthru
    _

</llo_original>
